<compile_context>
chip_gen: v6e
topology: v6e:2x2x1
jax: 0.10.0
libtpu: 0.0.40
codegen_flags: <defaults>
</compile_context>

<pallas_src>
import math

import jax
import jax.numpy as jnp
import numpy as np
from jax.experimental import pallas as pl
from jax.experimental.pallas import tpu as pltpu

_INV_SQRT2 = 1.0 / math.sqrt(2.0)


# ---------------------------------------------------------------------------
# Kernel
# ---------------------------------------------------------------------------
def _teacher_kernel(x_ref, wf_ref, wo_ref, y_ref):
    """One (folded) batch tile through: linear -> ScaledERF -> linear.

    x_ref  : (TB, k*IN)        folded input rows
    wf_ref : (k*IN, k*F)       block-diag feature weights (1/sqrt(2) pre-folded)
    wo_ref : (k*F, k*O)        block-diag output weights
    y_ref  : (TB, k*O)
    """
    h = jnp.dot(x_ref[...], wf_ref[...], preferred_element_type=jnp.float32)
    a = jax.lax.erf(h)                       # ScaledERF; scale folded into wf
    y = jnp.dot(a, wo_ref[...], preferred_element_type=jnp.float32)
    y_ref[...] = y.astype(y_ref.dtype)


# ---------------------------------------------------------------------------
# One-time weight packing
# ---------------------------------------------------------------------------
def _choose_fold(in_size, fdim, odim, *, max_fold=64, max_weight_bytes=8 << 20):
    """Power-of-two batch-fold factor k: make k*in, k*F, k*out lane-dense
    (>=128) without letting the block-diagonal folded weights exceed
    max_weight_bytes."""
    k = 1
    while k < max_fold and (in_size * k < 128 or fdim * k < 128 or odim * k < 128):
        nk = k * 2
        wbytes = 4 * nk * nk * (in_size * fdim + fdim * odim)
        if wbytes > max_weight_bytes:
            break
        k = nk
    return k


def _fold_weights(wf, wo, k, dtype):
    if k == 1:
        return wf, wo
    eye = jnp.eye(k, dtype=dtype)
    return jnp.kron(eye, wf), jnp.kron(eye, wo)   # block-diagonal expansion


def prepare_double_teacher_params(params, dtype=jnp.float32):
    """One-time packing. `params` uses nn.Linear layout:
    t*_feat: [hid, in], t*_out: [out, hid]."""
    w1f = jnp.asarray(params["t1_feat"], dtype).T * _INV_SQRT2   # (in, hid)
    w2f = jnp.asarray(params["t2_feat"], dtype).T * _INV_SQRT2
    w1o = jnp.asarray(params["t1_out"], dtype).T                 # (hid, out)
    w2o = jnp.asarray(params["t2_out"], dtype).T

    in_size, hid = w1f.shape
    out = w1o.shape[1]

    # Single-teacher (default forward) weights.
    k1 = _choose_fold(in_size, hid, out)
    wf1, wo1 = _fold_weights(w1f, w1o, k1, dtype)

    # Both-teacher fused weights: concat feature layers, block-diag output.
    wf_b = jnp.concatenate([w1f, w2f], axis=1)                   # (in, 2*hid)
    z = jnp.zeros((hid, out), dtype)
    wo_b = jnp.block([[w1o, z], [z, w2o]])                       # (2*hid, 2*out)
    kb = _choose_fold(in_size, 2 * hid, 2 * out)
    wf_bf, wo_bf = _fold_weights(wf_b, wo_b, kb, dtype)

    return {
        "in_size": int(in_size),
        "out_size": int(out),
        "single": {"wf": wf1, "wo": wo1, "fold": int(k1)},
        "both": {"wf": wf_bf, "wo": wo_bf, "fold": int(kb)},
    }


# ---------------------------------------------------------------------------
# Forward wrapper
# ---------------------------------------------------------------------------
def double_teacher_forward(x, packed, *, return_both_teachers=False,
                           tile_rows=16384):
    """Matches DoubleTeacher.forward after __init__ (_switch == False):
      forward(x)                            -> teacher_1(x)
      forward(x, return_both_teachers=True) -> (teacher_1(x), teacher_2(x))
    """
    B, in_size = x.shape
    assert in_size == packed["in_size"]
    out_size = packed["out_size"]

    variant = packed["both"] if return_both_teachers else packed["single"]
    wf, wo, k = variant["wf"], variant["wo"], variant["fold"]
    in_fold = wf.shape[0]        # k * in
    f_fold = wf.shape[1]         # k * (hid or 2*hid)
    n_out_fold = wo.shape[1]     # k * (out or 2*out)

    # Pad only the remainder modulo the fold factor (< k rows); the row-fold
    # reshape itself is free (contiguous, row-major).
    Bm = pl.cdiv(B, k) * k
    x_in = x if Bm == B else jnp.pad(x, ((0, Bm - B), (0, 0)))
    Bf = Bm // k
    xf = x_in.reshape(Bf, in_fold)

    # Batch tiling: big sublane-aligned tiles (per-step overhead ~0.35 us, so
    # tiny tiles are step-overhead-bound), but >=2 grid steps whenever there
    # is enough work so "parallel" can shard the batch across v7x's 2 TCs.
    if Bf <= 8:
        tbf = Bf                                          # full-dim block
    else:
        tbf_target = max(8, ((tile_rows // k) // 8) * 8)
        steps = pl.cdiv(Bf, tbf_target)
        if Bf >= 16:
            steps = max(steps, 2)
        tbf = max(8, (pl.cdiv(Bf, steps) // 8) * 8)
    grid = (pl.cdiv(Bf, tbf),)   # last block may be partial: OOB rows stay
                                 # row-local through both matmuls; writes masked.

    # Per-step VMEM (double-buffered x/out tiles + resident weights + f32
    # intermediates) stays well under the 32 MiB default scoped limit on all
    # of v5e/v6e/v7x for the default tile_rows.
    yf = pl.pallas_call(
        _teacher_kernel,
        out_shape=jax.ShapeDtypeStruct((Bf, n_out_fold), x.dtype),
        grid=grid,
        in_specs=[
            pl.BlockSpec((tbf, in_fold), lambda i: (i, 0)),
            pl.BlockSpec((in_fold, f_fold), lambda i: (0, 0)),     # resident
            pl.BlockSpec((f_fold, n_out_fold), lambda i: (0, 0)),  # resident
        ],
        out_specs=pl.BlockSpec((tbf, n_out_fold), lambda i: (i, 0)),
        compiler_params=pltpu.CompilerParams(
            dimension_semantics=("parallel",)),
    )(xf, wf, wo)

    y = yf.reshape(Bm, n_out_fold // k)[:B]
    if return_both_teachers:
        return y[:, :out_size], y[:, out_size:]
    return y


# ---------------------------------------------------------------------------
# Reference (plain JAX, unfused, unfolded)
# ---------------------------------------------------------------------------
def _reference_forward(x, params):
    def teacher(wf, wo):
        return jax.lax.erf((x @ wf.T) * _INV_SQRT2) @ wo.T
    return (teacher(params["t1_feat"], params["t1_out"]),
            teacher(params["t2_feat"], params["t2_out"]))


if __name__ == "__main__":
    B, in_size, hid_size, out_size = 8, 32, 32, 8

    key = jax.random.PRNGKey(0)
    k_x, k1f, k1o, k2f, k2o, k_x2, k_x3 = jax.random.split(key, 7)

    x = jax.random.normal(k_x, (B, in_size), dtype=jnp.float32)

    # N(0, 1) init, matching nn.init.normal_(w, 0.0, 1.0) (nn.Linear layout).
    params = {
        "t1_feat": jax.random.normal(k1f, (hid_size, in_size), dtype=jnp.float32),
        "t1_out":  jax.random.normal(k1o, (out_size, hid_size), dtype=jnp.float32),
        "t2_feat": jax.random.normal(k2f, (hid_size, in_size), dtype=jnp.float32),
        "t2_out":  jax.random.normal(k2o, (out_size, hid_size), dtype=jnp.float32),
    }
    packed = prepare_double_teacher_params(params)

    # Default path: teacher_1 only.
    y_single = double_teacher_forward(x, packed)
    # Both-teacher path: fused matmuls, one lane-dense output slab.
    y1, y2 = double_teacher_forward(x, packed, return_both_teachers=True)
    jax.block_until_ready((y_single, y1, y2))

    r1, r2 = _reference_forward(x, params)
    np.testing.assert_allclose(np.asarray(y_single), np.asarray(r1), rtol=1e-5, atol=1e-4)
    np.testing.assert_allclose(np.asarray(y1), np.asarray(r1), rtol=1e-5, atol=1e-4)
    np.testing.assert_allclose(np.asarray(y2), np.asarray(r2), rtol=1e-5, atol=1e-4)

    # Ragged batch (exercises fold-remainder padding + partial-block handling).
    B2 = 13
    x2 = jax.random.normal(k_x2, (B2, in_size), dtype=jnp.float32)
    z1, z2 = double_teacher_forward(x2, packed, return_both_teachers=True)
    jax.block_until_ready((z1, z2))
    s1, s2 = _reference_forward(x2, params)
    np.testing.assert_allclose(np.asarray(z1), np.asarray(s1), rtol=1e-5, atol=1e-4)
    np.testing.assert_allclose(np.asarray(z2), np.asarray(s2), rtol=1e-5, atol=1e-4)

    # Larger batch (exercises multi-step grid / dual-TC sharding path).
    B3 = 2048
    x3 = jax.random.normal(k_x3, (B3, in_size), dtype=jnp.float32)
    w1, w2 = double_teacher_forward(x3, packed, return_both_teachers=True)
    ws = double_teacher_forward(x3, packed)
    jax.block_until_ready((w1, w2, ws))
    t1, t2 = _reference_forward(x3, params)
    np.testing.assert_allclose(np.asarray(w1), np.asarray(t1), rtol=1e-5, atol=1e-4)
    np.testing.assert_allclose(np.asarray(w2), np.asarray(t2), rtol=1e-5, atol=1e-4)
    np.testing.assert_allclose(np.asarray(ws), np.asarray(t1), rtol=1e-5, atol=1e-4)

    print("KERNEL_OK")
</pallas_src>

<mosaic_0001>
module attributes {stable_mosaic.version = 11 : i64} {
  func.func @_teacher_kernel(%arg0: i32, %arg1: memref<1x512xf32, #tpu.memory_space<vmem>>, %arg2: memref<512x512xf32, #tpu.memory_space<vmem>>, %arg3: memref<512x128xf32, #tpu.memory_space<vmem>>, %arg4: memref<1x128xf32, #tpu.memory_space<vmem>>) attributes {dimension_semantics = [#tpu.dimension_semantics<parallel>], iteration_bounds = array<i64: 1>, scalar_prefetch = 0 : i64, scratch_operands = 0 : i64, tpu.core_type = #tpu.core_type<tc>, window_params = [{transform_indices = @transform_0, window_bounds = array<i64: 1, 512>}, {pipeline_mode = #tpu.pipeline_mode<synchronous>, transform_indices = @transform_1, window_bounds = array<i64: 512, 512>}, {pipeline_mode = #tpu.pipeline_mode<synchronous>, transform_indices = @transform_2, window_bounds = array<i64: 512, 128>}, {transform_indices = @transform_3, window_bounds = array<i64: 1, 128>}]} {
    %c0 = arith.constant 0 : index
    %c0_0 = arith.constant 0 : index
    %0 = vector.load %arg1[%c0, %c0_0] : memref<1x512xf32, #tpu.memory_space<vmem>>, vector<1x512xf32>
    %c0_1 = arith.constant 0 : index
    %c0_2 = arith.constant 0 : index
    %1 = vector.load %arg2[%c0_1, %c0_2] : memref<512x512xf32, #tpu.memory_space<vmem>>, vector<512x512xf32>
    %cst = arith.constant dense<0.000000e+00> : vector<1x512xf32>
    %2 = tpu.matmul %0, %1, %cst {dimension_numbers = #tpu.dot_dimension_numbers<[1], [0], [0], [1], [0, 0, 1, 1], [], []>} : vector<1x512xf32>, vector<512x512xf32>, vector<1x512xf32> -> vector<1x512xf32>
    %3 = math.erf %2 : vector<1x512xf32>
    %c0_3 = arith.constant 0 : index
    %c0_4 = arith.constant 0 : index
    %4 = vector.load %arg3[%c0_3, %c0_4] : memref<512x128xf32, #tpu.memory_space<vmem>>, vector<512x128xf32>
    %cst_5 = arith.constant dense<0.000000e+00> : vector<1x128xf32>
    %5 = tpu.matmul %3, %4, %cst_5 {dimension_numbers = #tpu.dot_dimension_numbers<[1], [0], [0], [1], [0, 0, 1, 1], [], []>} : vector<1x512xf32>, vector<512x128xf32>, vector<1x128xf32> -> vector<1x128xf32>
    %c0_6 = arith.constant 0 : index
    %c0_7 = arith.constant 0 : index
    %6 = vector.load %arg4[%c0_6, %c0_7] : memref<1x128xf32, #tpu.memory_space<vmem>>, vector<1x128xf32>
    tpu.vector_store %arg4[%c0_6, %c0_7], %5 {strides = array<i32>} : memref<1x128xf32, #tpu.memory_space<vmem>>, vector<1x128xf32>,
    return
  }
  func.func @transform_0(%arg0: i32) -> (i32, i32) {
    %c0_i32 = arith.constant 0 : i32
    %c0_i32_0 = arith.constant 0 : i32
    return %arg0, %c0_i32 : i32, i32
  }
  func.func @transform_1(%arg0: i32) -> (i32, i32) {
    %c0_i32 = arith.constant 0 : i32
    %c0_i32_0 = arith.constant 0 : i32
    %c0_i32_1 = arith.constant 0 : i32
    return %c0_i32, %c0_i32_0 : i32, i32
  }
  func.func @transform_2(%arg0: i32) -> (i32, i32) {
    %c0_i32 = arith.constant 0 : i32
    %c0_i32_0 = arith.constant 0 : i32
    %c0_i32_1 = arith.constant 0 : i32
    return %c0_i32, %c0_i32_0 : i32, i32
  }
  func.func @transform_3(%arg0: i32) -> (i32, i32) {
    %c0_i32 = arith.constant 0 : i32
    %c0_i32_0 = arith.constant 0 : i32
    return %arg0, %c0_i32 : i32, i32
  }
}

</mosaic_0001>

<llo_original>
// kernel: tpu_custom_call.1
$region0: #{tpu_custom_call.1}
  #allocation0 [shape = 'u32[]', space=smem, size = 0x4, offset = 0x4, fixed_abs, tag = 'smem constant byte address 0x4 - core index']
  #allocation1 [shape = 'u32[144,128]{1,0:T(1,128)}', space=vmem, size = 0x12000, scoped, tag = 'internal scratch']
  %s0 = inlined_call_operand.hbm [shape: f32[1,512], index: 0, kind: input, shape index: {}]
  %s1 = inlined_call_operand.hbm [shape: f32[512,512], index: 1, kind: input, shape index: {}]
  %s2 = inlined_call_operand.hbm [shape: f32[512,128], index: 2, kind: input, shape index: {}]
  %s3 = inlined_call_operand.hbm [shape: f32[1,128], index: 3, kind: output, shape index: {}]
  %s4 = sld [smem:[#allocation0]]
  $region34: #{tpu_custom_call.1} parent=0
    _
  %s6 = ssub.s32 1, %s4
  %s7 = scalar_select 0, %s6, %s4
  $region1: #{tpu_custom_call.1} parent=0
    #allocation2 [shape = 'u8[2048]{0}', space=vmem, size = 0x800, scoped, tag = 'input window, operand 0, single buffered']
    #allocation3 [shape = 's32[1]{0}', space=sflag, size = 0x4, scoped, tag = 'scoped memory for tpu_custom_call.1']
    #allocation4 [shape = 's32[1]{0}', space=sflag, size = 0x4, scoped, tag = 'scoped memory for tpu_custom_call.1']
    #allocation5 [shape = 'u8[1048576]{0}', space=vmem, size = 0x100000, scoped, tag = 'input window, operand 1, single buffered']
    #allocation6 [shape = 's32[1]{0}', space=sflag, size = 0x4, scoped, tag = 'scoped memory for tpu_custom_call.1']
    #allocation7 [shape = 'u8[262144]{0}', space=vmem, size = 0x40000, scoped, tag = 'input window, operand 2, single buffered']
    #allocation8 [shape = 'u8[512]{0}', space=vmem, size = 0x400, scoped, tag = 'output window, operand 0, single buffered']
    %8 = vsyncpa [#allocation3], 0
    %9 = vsyncpa [#allocation6], 0
    %10 = vsyncpa [#allocation4], 0
    // Predicated region
    $region2: #{tpu_custom_call.1} parent=1 // pred_check
      _
    $region3: #{tpu_custom_call.1} parent=1 // pred_check_branch
      %12 = sbr.rel (0) target = $region5
    $region4: #{tpu_custom_call.1} parent=1 // pred_region
      %s14 = ssub.s32 64, 64
      %15 = vsyncadd [#allocation3], %s14
      %s17 = sshll.u32 [#allocation2], 4
      %s18 = int_to_ptr.vmem [resolvable:$true] %s17
      %20 = dma.hbm_to_vmem [thread:$0]  %s0, 64, %s18, [#allocation3]
    $region5: #{tpu_custom_call.1} parent=1 // pred_fallthru
      _
    // Predicated region
    $region6: #{tpu_custom_call.1} parent=1 // pred_check
      _
    $region7: #{tpu_custom_call.1} parent=1 // pred_check_branch
      %22 = sbr.rel (0) target = $region9
    $region8: #{tpu_custom_call.1} parent=1 // pred_region
      %s24 = ssub.s32 32768, 32768
      %25 = vsyncadd [#allocation6], %s24
      %s26 = sshll.u32 [#allocation5], 4
      %s27 = int_to_ptr.vmem [resolvable:$true] %s26
      %32 = dma.hbm_to_vmem [thread:$0]  %s1, 32768, %s27, [#allocation6], 512, 512, 32
    $region9: #{tpu_custom_call.1} parent=1 // pred_fallthru
      _
    // Predicated region
    $region10: #{tpu_custom_call.1} parent=1 // pred_check
      _
    $region11: #{tpu_custom_call.1} parent=1 // pred_check_branch
      %34 = sbr.rel (0) target = $region13
    $region12: #{tpu_custom_call.1} parent=1 // pred_region
      %s36 = ssub.s32 8192, 8192
      %37 = vsyncadd [#allocation6], %s36
      %s38 = sshll.u32 [#allocation7], 4
      %s39 = int_to_ptr.vmem [resolvable:$true] %s38
      %44 = dma.hbm_to_vmem [thread:$0]  %s2, 8192, %s39, [#allocation6], 128, 128, 8
    $region13: #{tpu_custom_call.1} parent=1 // pred_fallthru
      _
    // Predicated region
    $region14: #{tpu_custom_call.1} parent=1 // pred_check
      _
    $region15: #{tpu_custom_call.1} parent=1 // pred_check_branch
      %46 = sbr.rel (0) target = $region17
    $region16: #{tpu_custom_call.1} parent=1 // pred_region
      %47 = dma.done [#allocation3], 64
    $region17: #{tpu_custom_call.1} parent=1 // pred_fallthru
      _
    // Predicated region
    $region18: #{tpu_custom_call.1} parent=1 // pred_check
      _
    $region19: #{tpu_custom_call.1} parent=1 // pred_check_branch
      %49 = sbr.rel (0) target = $region21
    $region20: #{tpu_custom_call.1} parent=1 // pred_region
      %50 = dma.done [#allocation6], 32768
    $region21: #{tpu_custom_call.1} parent=1 // pred_fallthru
      _
    // Predicated region
    $region22: #{tpu_custom_call.1} parent=1 // pred_check
      _
    $region23: #{tpu_custom_call.1} parent=1 // pred_check_branch
      %52 = sbr.rel (0) target = $region25
    $region24: #{tpu_custom_call.1} parent=1 // pred_region
      %53 = dma.done [#allocation6], 8192
    $region25: #{tpu_custom_call.1} parent=1 // pred_fallthru
      _
    %v54 = vld [vmem:[#allocation2] sm:$0xf]
    %v55 = vld [vmem:[#allocation5] sm:$0xff]
    %v56 = vld [vmem:[#allocation5 + $0x8] sm:$0xff]
    %v57 = vld [vmem:[#allocation5 + $0x10] sm:$0xff]
    %v58 = vld [vmem:[#allocation5 + $0x18] sm:$0xff]
    %v59 = vld [vmem:[#allocation5 + $0x20] sm:$0xff]
    %v60 = vld [vmem:[#allocation5 + $0x28] sm:$0xff]
    %v61 = vld [vmem:[#allocation5 + $0x30] sm:$0xff]
    %v62 = vld [vmem:[#allocation5 + $0x38] sm:$0xff]
    %v63 = vld [vmem:[#allocation5 + $0x40] sm:$0xff]
    %v64 = vld [vmem:[#allocation5 + $0x48] sm:$0xff]
    %v65 = vld [vmem:[#allocation5 + $0x50] sm:$0xff]
    %v66 = vld [vmem:[#allocation5 + $0x58] sm:$0xff]
    %v67 = vld [vmem:[#allocation5 + $0x60] sm:$0xff]
    %v68 = vld [vmem:[#allocation5 + $0x68] sm:$0xff]
    %v69 = vld [vmem:[#allocation5 + $0x70] sm:$0xff]
    %v70 = vld [vmem:[#allocation5 + $0x78] sm:$0xff]
    %v71 = vld [vmem:[#allocation5 + $0x80] sm:$0xff]
    %v72 = vld [vmem:[#allocation5 + $0x88] sm:$0xff]
    %v73 = vld [vmem:[#allocation5 + $0x90] sm:$0xff]
    %v74 = vld [vmem:[#allocation5 + $0x98] sm:$0xff]
    %v75 = vld [vmem:[#allocation5 + $0xa0] sm:$0xff]
    %v76 = vld [vmem:[#allocation5 + $0xa8] sm:$0xff]
    %v77 = vld [vmem:[#allocation5 + $0xb0] sm:$0xff]
    %v78 = vld [vmem:[#allocation5 + $0xb8] sm:$0xff]
    %v79 = vld [vmem:[#allocation5 + $0xc0] sm:$0xff]
    %v80 = vld [vmem:[#allocation5 + $0xc8] sm:$0xff]
    %v81 = vld [vmem:[#allocation5 + $0xd0] sm:$0xff]
    %v82 = vld [vmem:[#allocation5 + $0xd8] sm:$0xff]
    %v83 = vld [vmem:[#allocation5 + $0xe0] sm:$0xff]
    %v84 = vld [vmem:[#allocation5 + $0xe8] sm:$0xff]
    %v85 = vld [vmem:[#allocation5 + $0xf0] sm:$0xff]
    %v86 = vld [vmem:[#allocation5 + $0xf8] sm:$0xff]
    %v87 = vld [vmem:[#allocation5 + $0x100] sm:$0xff]
    %v88 = vld [vmem:[#allocation5 + $0x108] sm:$0xff]
    %v89 = vld [vmem:[#allocation5 + $0x110] sm:$0xff]
    %v90 = vld [vmem:[#allocation5 + $0x118] sm:$0xff]
    %v91 = vld [vmem:[#allocation5 + $0x120] sm:$0xff]
    %v92 = vld [vmem:[#allocation5 + $0x128] sm:$0xff]
    %v93 = vld [vmem:[#allocation5 + $0x130] sm:$0xff]
    %v94 = vld [vmem:[#allocation5 + $0x138] sm:$0xff]
    %v95 = vld [vmem:[#allocation5 + $0x140] sm:$0xff]
    %v96 = vld [vmem:[#allocation5 + $0x148] sm:$0xff]
    %v97 = vld [vmem:[#allocation5 + $0x150] sm:$0xff]
    %v98 = vld [vmem:[#allocation5 + $0x158] sm:$0xff]
    %v99 = vld [vmem:[#allocation5 + $0x160] sm:$0xff]
    %v100 = vld [vmem:[#allocation5 + $0x168] sm:$0xff]
    %v101 = vld [vmem:[#allocation5 + $0x170] sm:$0xff]
    %v102 = vld [vmem:[#allocation5 + $0x178] sm:$0xff]
    %v103 = vld [vmem:[#allocation5 + $0x180] sm:$0xff]
    %v104 = vld [vmem:[#allocation5 + $0x188] sm:$0xff]
    %v105 = vld [vmem:[#allocation5 + $0x190] sm:$0xff]
    %v106 = vld [vmem:[#allocation5 + $0x198] sm:$0xff]
    %v107 = vld [vmem:[#allocation5 + $0x1a0] sm:$0xff]
    %v108 = vld [vmem:[#allocation5 + $0x1a8] sm:$0xff]
    %v109 = vld [vmem:[#allocation5 + $0x1b0] sm:$0xff]
    %v110 = vld [vmem:[#allocation5 + $0x1b8] sm:$0xff]
    %v111 = vld [vmem:[#allocation5 + $0x1c0] sm:$0xff]
    %v112 = vld [vmem:[#allocation5 + $0x1c8] sm:$0xff]
    %v113 = vld [vmem:[#allocation5 + $0x1d0] sm:$0xff]
    %v114 = vld [vmem:[#allocation5 + $0x1d8] sm:$0xff]
    %v115 = vld [vmem:[#allocation5 + $0x1e0] sm:$0xff]
    %v116 = vld [vmem:[#allocation5 + $0x1e8] sm:$0xff]
    %v117 = vld [vmem:[#allocation5 + $0x1f0] sm:$0xff]
    %v118 = vld [vmem:[#allocation5 + $0x1f8] sm:$0xff]
    %v119 = vld [vmem:[#allocation5 + $0x200] sm:$0xff]
    %v120 = vld [vmem:[#allocation5 + $0x208] sm:$0xff]
    %v121 = vld [vmem:[#allocation5 + $0x210] sm:$0xff]
    %v122 = vld [vmem:[#allocation5 + $0x218] sm:$0xff]
    %v123 = vld [vmem:[#allocation5 + $0x220] sm:$0xff]
    %v124 = vld [vmem:[#allocation5 + $0x228] sm:$0xff]
    %v125 = vld [vmem:[#allocation5 + $0x230] sm:$0xff]
    %v126 = vld [vmem:[#allocation5 + $0x238] sm:$0xff]
    %v127 = vld [vmem:[#allocation5 + $0x240] sm:$0xff]
    %v128 = vld [vmem:[#allocation5 + $0x248] sm:$0xff]
    %v129 = vld [vmem:[#allocation5 + $0x250] sm:$0xff]
    %v130 = vld [vmem:[#allocation5 + $0x258] sm:$0xff]
    %v131 = vld [vmem:[#allocation5 + $0x260] sm:$0xff]
    %v132 = vld [vmem:[#allocation5 + $0x268] sm:$0xff]
    %v133 = vld [vmem:[#allocation5 + $0x270] sm:$0xff]
    %v134 = vld [vmem:[#allocation5 + $0x278] sm:$0xff]
    %v135 = vld [vmem:[#allocation5 + $0x280] sm:$0xff]
    %v136 = vld [vmem:[#allocation5 + $0x288] sm:$0xff]
    %v137 = vld [vmem:[#allocation5 + $0x290] sm:$0xff]
    %v138 = vld [vmem:[#allocation5 + $0x298] sm:$0xff]
    %v139 = vld [vmem:[#allocation5 + $0x2a0] sm:$0xff]
    %v140 = vld [vmem:[#allocation5 + $0x2a8] sm:$0xff]
    %v141 = vld [vmem:[#allocation5 + $0x2b0] sm:$0xff]
    %v142 = vld [vmem:[#allocation5 + $0x2b8] sm:$0xff]
    %v143 = vld [vmem:[#allocation5 + $0x2c0] sm:$0xff]
    %v144 = vld [vmem:[#allocation5 + $0x2c8] sm:$0xff]
    %v145 = vld [vmem:[#allocation5 + $0x2d0] sm:$0xff]
    %v146 = vld [vmem:[#allocation5 + $0x2d8] sm:$0xff]
    %v147 = vld [vmem:[#allocation5 + $0x2e0] sm:$0xff]
    %v148 = vld [vmem:[#allocation5 + $0x2e8] sm:$0xff]
    %v149 = vld [vmem:[#allocation5 + $0x2f0] sm:$0xff]
    %v150 = vld [vmem:[#allocation5 + $0x2f8] sm:$0xff]
    %v151 = vld [vmem:[#allocation5 + $0x300] sm:$0xff]
    %v152 = vld [vmem:[#allocation5 + $0x308] sm:$0xff]
    %v153 = vld [vmem:[#allocation5 + $0x310] sm:$0xff]
    %v154 = vld [vmem:[#allocation5 + $0x318] sm:$0xff]
    %v155 = vld [vmem:[#allocation5 + $0x320] sm:$0xff]
    %v156 = vld [vmem:[#allocation5 + $0x328] sm:$0xff]
    %v157 = vld [vmem:[#allocation5 + $0x330] sm:$0xff]
    %v158 = vld [vmem:[#allocation5 + $0x338] sm:$0xff]
    %v159 = vld [vmem:[#allocation5 + $0x340] sm:$0xff]
    %v160 = vld [vmem:[#allocation5 + $0x348] sm:$0xff]
    %v161 = vld [vmem:[#allocation5 + $0x350] sm:$0xff]
    %v162 = vld [vmem:[#allocation5 + $0x358] sm:$0xff]
    %v163 = vld [vmem:[#allocation5 + $0x360] sm:$0xff]
    %v164 = vld [vmem:[#allocation5 + $0x368] sm:$0xff]
    %v165 = vld [vmem:[#allocation5 + $0x370] sm:$0xff]
    %v166 = vld [vmem:[#allocation5 + $0x378] sm:$0xff]
    %v167 = vld [vmem:[#allocation5 + $0x380] sm:$0xff]
    %v168 = vld [vmem:[#allocation5 + $0x388] sm:$0xff]
    %v169 = vld [vmem:[#allocation5 + $0x390] sm:$0xff]
    %v170 = vld [vmem:[#allocation5 + $0x398] sm:$0xff]
    %v171 = vld [vmem:[#allocation5 + $0x3a0] sm:$0xff]
    %v172 = vld [vmem:[#allocation5 + $0x3a8] sm:$0xff]
    %v173 = vld [vmem:[#allocation5 + $0x3b0] sm:$0xff]
    %v174 = vld [vmem:[#allocation5 + $0x3b8] sm:$0xff]
    %v175 = vld [vmem:[#allocation5 + $0x3c0] sm:$0xff]
    %v176 = vld [vmem:[#allocation5 + $0x3c8] sm:$0xff]
    %v177 = vld [vmem:[#allocation5 + $0x3d0] sm:$0xff]
    %v178 = vld [vmem:[#allocation5 + $0x3d8] sm:$0xff]
    %v179 = vld [vmem:[#allocation5 + $0x3e0] sm:$0xff]
    %v180 = vld [vmem:[#allocation5 + $0x3e8] sm:$0xff]
    %v181 = vld [vmem:[#allocation5 + $0x3f0] sm:$0xff]
    %v182 = vld [vmem:[#allocation5 + $0x3f8] sm:$0xff]
    %v183 = vld [vmem:[#allocation5 + $0x400] sm:$0xff]
    %v184 = vld [vmem:[#allocation5 + $0x408] sm:$0xff]
    %v185 = vld [vmem:[#allocation5 + $0x410] sm:$0xff]
    %v186 = vld [vmem:[#allocation5 + $0x418] sm:$0xff]
    %v187 = vld [vmem:[#allocation5 + $0x420] sm:$0xff]
    %v188 = vld [vmem:[#allocation5 + $0x428] sm:$0xff]
    %v189 = vld [vmem:[#allocation5 + $0x430] sm:$0xff]
    %v190 = vld [vmem:[#allocation5 + $0x438] sm:$0xff]
    %v191 = vld [vmem:[#allocation5 + $0x440] sm:$0xff]
    %v192 = vld [vmem:[#allocation5 + $0x448] sm:$0xff]
    %v193 = vld [vmem:[#allocation5 + $0x450] sm:$0xff]
    %v194 = vld [vmem:[#allocation5 + $0x458] sm:$0xff]
    %v195 = vld [vmem:[#allocation5 + $0x460] sm:$0xff]
    %v196 = vld [vmem:[#allocation5 + $0x468] sm:$0xff]
    %v197 = vld [vmem:[#allocation5 + $0x470] sm:$0xff]
    %v198 = vld [vmem:[#allocation5 + $0x478] sm:$0xff]
    %v199 = vld [vmem:[#allocation5 + $0x480] sm:$0xff]
    %v200 = vld [vmem:[#allocation5 + $0x488] sm:$0xff]
    %v201 = vld [vmem:[#allocation5 + $0x490] sm:$0xff]
    %v202 = vld [vmem:[#allocation5 + $0x498] sm:$0xff]
    %v203 = vld [vmem:[#allocation5 + $0x4a0] sm:$0xff]
    %v204 = vld [vmem:[#allocation5 + $0x4a8] sm:$0xff]
    %v205 = vld [vmem:[#allocation5 + $0x4b0] sm:$0xff]
    %v206 = vld [vmem:[#allocation5 + $0x4b8] sm:$0xff]
    %v207 = vld [vmem:[#allocation5 + $0x4c0] sm:$0xff]
    %v208 = vld [vmem:[#allocation5 + $0x4c8] sm:$0xff]
    %v209 = vld [vmem:[#allocation5 + $0x4d0] sm:$0xff]
    %v210 = vld [vmem:[#allocation5 + $0x4d8] sm:$0xff]
    %v211 = vld [vmem:[#allocation5 + $0x4e0] sm:$0xff]
    %v212 = vld [vmem:[#allocation5 + $0x4e8] sm:$0xff]
    %v213 = vld [vmem:[#allocation5 + $0x4f0] sm:$0xff]
    %v214 = vld [vmem:[#allocation5 + $0x4f8] sm:$0xff]
    %v215 = vld [vmem:[#allocation5 + $0x500] sm:$0xff]
    %v216 = vld [vmem:[#allocation5 + $0x508] sm:$0xff]
    %v217 = vld [vmem:[#allocation5 + $0x510] sm:$0xff]
    %v218 = vld [vmem:[#allocation5 + $0x518] sm:$0xff]
    %v219 = vld [vmem:[#allocation5 + $0x520] sm:$0xff]
    %v220 = vld [vmem:[#allocation5 + $0x528] sm:$0xff]
    %v221 = vld [vmem:[#allocation5 + $0x530] sm:$0xff]
    %v222 = vld [vmem:[#allocation5 + $0x538] sm:$0xff]
    %v223 = vld [vmem:[#allocation5 + $0x540] sm:$0xff]
    %v224 = vld [vmem:[#allocation5 + $0x548] sm:$0xff]
    %v225 = vld [vmem:[#allocation5 + $0x550] sm:$0xff]
    %v226 = vld [vmem:[#allocation5 + $0x558] sm:$0xff]
    %v227 = vld [vmem:[#allocation5 + $0x560] sm:$0xff]
    %v228 = vld [vmem:[#allocation5 + $0x568] sm:$0xff]
    %v229 = vld [vmem:[#allocation5 + $0x570] sm:$0xff]
    %v230 = vld [vmem:[#allocation5 + $0x578] sm:$0xff]
    %v231 = vld [vmem:[#allocation5 + $0x580] sm:$0xff]
    %v232 = vld [vmem:[#allocation5 + $0x588] sm:$0xff]
    %v233 = vld [vmem:[#allocation5 + $0x590] sm:$0xff]
    %v234 = vld [vmem:[#allocation5 + $0x598] sm:$0xff]
    %v235 = vld [vmem:[#allocation5 + $0x5a0] sm:$0xff]
    %v236 = vld [vmem:[#allocation5 + $0x5a8] sm:$0xff]
    %v237 = vld [vmem:[#allocation5 + $0x5b0] sm:$0xff]
    %v238 = vld [vmem:[#allocation5 + $0x5b8] sm:$0xff]
    %v239 = vld [vmem:[#allocation5 + $0x5c0] sm:$0xff]
    %v240 = vld [vmem:[#allocation5 + $0x5c8] sm:$0xff]
    %v241 = vld [vmem:[#allocation5 + $0x5d0] sm:$0xff]
    %v242 = vld [vmem:[#allocation5 + $0x5d8] sm:$0xff]
    %v243 = vld [vmem:[#allocation5 + $0x5e0] sm:$0xff]
    %v244 = vld [vmem:[#allocation5 + $0x5e8] sm:$0xff]
    %v245 = vld [vmem:[#allocation5 + $0x5f0] sm:$0xff]
    %v246 = vld [vmem:[#allocation5 + $0x5f8] sm:$0xff]
    %v247 = vld [vmem:[#allocation5 + $0x600] sm:$0xff]
    %v248 = vld [vmem:[#allocation5 + $0x608] sm:$0xff]
    %v249 = vld [vmem:[#allocation5 + $0x610] sm:$0xff]
    %v250 = vld [vmem:[#allocation5 + $0x618] sm:$0xff]
    %v251 = vld [vmem:[#allocation5 + $0x620] sm:$0xff]
    %v252 = vld [vmem:[#allocation5 + $0x628] sm:$0xff]
    %v253 = vld [vmem:[#allocation5 + $0x630] sm:$0xff]
    %v254 = vld [vmem:[#allocation5 + $0x638] sm:$0xff]
    %v255 = vld [vmem:[#allocation5 + $0x640] sm:$0xff]
    %v256 = vld [vmem:[#allocation5 + $0x648] sm:$0xff]
    %v257 = vld [vmem:[#allocation5 + $0x650] sm:$0xff]
    %v258 = vld [vmem:[#allocation5 + $0x658] sm:$0xff]
    %v259 = vld [vmem:[#allocation5 + $0x660] sm:$0xff]
    %v260 = vld [vmem:[#allocation5 + $0x668] sm:$0xff]
    %v261 = vld [vmem:[#allocation5 + $0x670] sm:$0xff]
    %v262 = vld [vmem:[#allocation5 + $0x678] sm:$0xff]
    %v263 = vld [vmem:[#allocation5 + $0x680] sm:$0xff]
    %v264 = vld [vmem:[#allocation5 + $0x688] sm:$0xff]
    %v265 = vld [vmem:[#allocation5 + $0x690] sm:$0xff]
    %v266 = vld [vmem:[#allocation5 + $0x698] sm:$0xff]
    %v267 = vld [vmem:[#allocation5 + $0x6a0] sm:$0xff]
    %v268 = vld [vmem:[#allocation5 + $0x6a8] sm:$0xff]
    %v269 = vld [vmem:[#allocation5 + $0x6b0] sm:$0xff]
    %v270 = vld [vmem:[#allocation5 + $0x6b8] sm:$0xff]
    %v271 = vld [vmem:[#allocation5 + $0x6c0] sm:$0xff]
    %v272 = vld [vmem:[#allocation5 + $0x6c8] sm:$0xff]
    %v273 = vld [vmem:[#allocation5 + $0x6d0] sm:$0xff]
    %v274 = vld [vmem:[#allocation5 + $0x6d8] sm:$0xff]
    %v275 = vld [vmem:[#allocation5 + $0x6e0] sm:$0xff]
    %v276 = vld [vmem:[#allocation5 + $0x6e8] sm:$0xff]
    %v277 = vld [vmem:[#allocation5 + $0x6f0] sm:$0xff]
    %v278 = vld [vmem:[#allocation5 + $0x6f8] sm:$0xff]
    %v279 = vld [vmem:[#allocation5 + $0x700] sm:$0xff]
    %v280 = vld [vmem:[#allocation5 + $0x708] sm:$0xff]
    %v281 = vld [vmem:[#allocation5 + $0x710] sm:$0xff]
    %v282 = vld [vmem:[#allocation5 + $0x718] sm:$0xff]
    %v283 = vld [vmem:[#allocation5 + $0x720] sm:$0xff]
    %v284 = vld [vmem:[#allocation5 + $0x728] sm:$0xff]
    %v285 = vld [vmem:[#allocation5 + $0x730] sm:$0xff]
    %v286 = vld [vmem:[#allocation5 + $0x738] sm:$0xff]
    %v287 = vld [vmem:[#allocation5 + $0x740] sm:$0xff]
    %v288 = vld [vmem:[#allocation5 + $0x748] sm:$0xff]
    %v289 = vld [vmem:[#allocation5 + $0x750] sm:$0xff]
    %v290 = vld [vmem:[#allocation5 + $0x758] sm:$0xff]
    %v291 = vld [vmem:[#allocation5 + $0x760] sm:$0xff]
    %v292 = vld [vmem:[#allocation5 + $0x768] sm:$0xff]
    %v293 = vld [vmem:[#allocation5 + $0x770] sm:$0xff]
    %v294 = vld [vmem:[#allocation5 + $0x778] sm:$0xff]
    %v295 = vld [vmem:[#allocation5 + $0x780] sm:$0xff]
    %v296 = vld [vmem:[#allocation5 + $0x788] sm:$0xff]
    %v297 = vld [vmem:[#allocation5 + $0x790] sm:$0xff]
    %v298 = vld [vmem:[#allocation5 + $0x798] sm:$0xff]
    %v299 = vld [vmem:[#allocation5 + $0x7a0] sm:$0xff]
    %v300 = vld [vmem:[#allocation5 + $0x7a8] sm:$0xff]
    %v301 = vld [vmem:[#allocation5 + $0x7b0] sm:$0xff]
    %v302 = vld [vmem:[#allocation5 + $0x7b8] sm:$0xff]
    %v303 = vld [vmem:[#allocation5 + $0x7c0] sm:$0xff]
    %v304 = vld [vmem:[#allocation5 + $0x7c8] sm:$0xff]
    %v305 = vld [vmem:[#allocation5 + $0x7d0] sm:$0xff]
    %v306 = vld [vmem:[#allocation5 + $0x7d8] sm:$0xff]
    %v307 = vld [vmem:[#allocation5 + $0x7e0] sm:$0xff]
    %v308 = vld [vmem:[#allocation5 + $0x7e8] sm:$0xff]
    %v309 = vld [vmem:[#allocation5 + $0x7f0] sm:$0xff]
    %v310 = vld [vmem:[#allocation5 + $0x7f8] sm:$0xff]
    %v312 = vlaneseq
    %v313 = vshrl.u32 %v312, 7
    %v314 = vsub.s32 0, %v313
    %v315 = vrot.slane %v54, %v314
    %v316 = vlaneseq
    %v317 = vshrl.u32 %v316, 7
    %v318 = vsub.s32 1, %v317
    %v319 = vrot.slane %v54, %v318
    %v320 = vlaneseq
    %v321 = vshrl.u32 %v320, 7
    %v322 = vsub.s32 2, %v321
    %v323 = vrot.slane %v54, %v322
    %v324 = vlaneseq
    %v325 = vshrl.u32 %v324, 7
    %v326 = vsub.s32 3, %v325
    %v327 = vrot.slane %v54, %v326
    %332 = vmatprep.subr.mxu0 %v116
    %333 = vmatpush1.msra.mxu0 %v115
    %334 = vmatprep.subr.mxu0 %v112
    %335 = vmatpush1.msra.mxu0 %v111
    %336 = vmatprep.subr.mxu0 %v108
    %337 = vmatpush1.msra.mxu0 %v107
    %338 = vmatprep.subr.mxu0 %v104
    %339 = vmatpush1.msra.mxu0 %v103
    %340 = vmatprep.subr.mxu0 %v100
    %341 = vmatpush1.msra.mxu0 %v99
    %342 = vmatprep.subr.mxu0 %v96
    %343 = vmatpush1.msra.mxu0 %v95
    %344 = vmatprep.subr.mxu0 %v92
    %345 = vmatpush1.msra.mxu0 %v91
    %346 = vmatprep.subr.mxu0 %v88
    %347 = vmatpush1.msra.mxu0 %v87
    %348 = vmatprep.subr.mxu0 %v84
    %349 = vmatpush1.msra.mxu0 %v83
    %350 = vmatprep.subr.mxu0 %v80
    %351 = vmatpush1.msra.mxu0 %v79
    %352 = vmatprep.subr.mxu0 %v76
    %353 = vmatpush1.msra.mxu0 %v75
    %354 = vmatprep.subr.mxu0 %v72
    %355 = vmatpush1.msra.mxu0 %v71
    %356 = vmatprep.subr.mxu0 %v68
    %357 = vmatpush1.msra.mxu0 %v67
    %358 = vmatprep.subr.mxu0 %v64
    %359 = vmatpush1.msra.mxu0 %v63
    %360 = vmatprep.subr.mxu0 %v60
    %361 = vmatpush1.msra.mxu0 %v59
    %362 = vmatprep.subr.mxu0 %v56
    %363 = vmatpush1.msra.mxu0 %v55
    %364 = vmatprep.subr.mxu0 %v180
    %365 = vmatpush2.msra.mxu0 %v179
    %366 = vmatprep.subr.mxu0 %v176
    %367 = vmatpush2.msra.mxu0 %v175
    %368 = vmatprep.subr.mxu0 %v172
    %369 = vmatpush2.msra.mxu0 %v171
    %370 = vmatprep.subr.mxu0 %v168
    %371 = vmatpush2.msra.mxu0 %v167
    %372 = vmatprep.subr.mxu0 %v164
    %373 = vmatpush2.msra.mxu0 %v163
    %374 = vmatprep.subr.mxu0 %v160
    %375 = vmatpush2.msra.mxu0 %v159
    %376 = vmatprep.subr.mxu0 %v156
    %377 = vmatpush2.msra.mxu0 %v155
    %378 = vmatprep.subr.mxu0 %v152
    %379 = vmatpush2.msra.mxu0 %v151
    %380 = vmatprep.subr.mxu0 %v148
    %381 = vmatpush2.msra.mxu0 %v147
    %382 = vmatprep.subr.mxu0 %v144
    %383 = vmatpush2.msra.mxu0 %v143
    %384 = vmatprep.subr.mxu0 %v140
    %385 = vmatpush2.msra.mxu0 %v139
    %386 = vmatprep.subr.mxu0 %v136
    %387 = vmatpush2.msra.mxu0 %v135
    %388 = vmatprep.subr.mxu0 %v132
    %389 = vmatpush2.msra.mxu0 %v131
    %390 = vmatprep.subr.mxu0 %v128
    %391 = vmatpush2.msra.mxu0 %v127
    %392 = vmatprep.subr.mxu0 %v124
    %393 = vmatpush2.msra.mxu0 %v123
    %394 = vmatprep.subr.mxu0 %v120
    %395 = vmatpush2.msra.mxu0 %v119
    %396 = vmatprep.mubr.f32.mxu0 %v319
    %397 = vmatmul.mubr.f32.gmra.mxu0 %v315
    %v398 = vpop.f32.mrf.mxu0
    %v399 = vadd.f32 0.0, %v398
    %v400 = vpop.f32.mrf.mxu0
    %v401 = vadd.f32 0.0, %v400
    %402 = vdwg.mxu0
    %403 = vmatprep.subr.mxu0 %v244
    %404 = vmatpush1.msra.mxu0 %v243
    %405 = vmatprep.subr.mxu0 %v240
    %406 = vmatpush1.msra.mxu0 %v239
    %407 = vmatprep.subr.mxu0 %v236
    %408 = vmatpush1.msra.mxu0 %v235
    %409 = vmatprep.subr.mxu0 %v232
    %410 = vmatpush1.msra.mxu0 %v231
    %411 = vmatprep.subr.mxu0 %v228
    %412 = vmatpush1.msra.mxu0 %v227
    %413 = vmatprep.subr.mxu0 %v224
    %414 = vmatpush1.msra.mxu0 %v223
    %415 = vmatprep.subr.mxu0 %v220
    %416 = vmatpush1.msra.mxu0 %v219
    %417 = vmatprep.subr.mxu0 %v216
    %418 = vmatpush1.msra.mxu0 %v215
    %419 = vmatprep.subr.mxu0 %v212
    %420 = vmatpush1.msra.mxu0 %v211
    %421 = vmatprep.subr.mxu0 %v208
    %422 = vmatpush1.msra.mxu0 %v207
    %423 = vmatprep.subr.mxu0 %v204
    %424 = vmatpush1.msra.mxu0 %v203
    %425 = vmatprep.subr.mxu0 %v200
    %426 = vmatpush1.msra.mxu0 %v199
    %427 = vmatprep.subr.mxu0 %v196
    %428 = vmatpush1.msra.mxu0 %v195
    %429 = vmatprep.subr.mxu0 %v192
    %430 = vmatpush1.msra.mxu0 %v191
    %431 = vmatprep.subr.mxu0 %v188
    %432 = vmatpush1.msra.mxu0 %v187
    %433 = vmatprep.subr.mxu0 %v184
    %434 = vmatpush1.msra.mxu0 %v183
    %435 = vmatprep.subr.mxu0 %v308
    %436 = vmatpush2.msra.mxu0 %v307
    %437 = vmatprep.subr.mxu0 %v304
    %438 = vmatpush2.msra.mxu0 %v303
    %439 = vmatprep.subr.mxu0 %v300
    %440 = vmatpush2.msra.mxu0 %v299
    %441 = vmatprep.subr.mxu0 %v296
    %442 = vmatpush2.msra.mxu0 %v295
    %443 = vmatprep.subr.mxu0 %v292
    %444 = vmatpush2.msra.mxu0 %v291
    %445 = vmatprep.subr.mxu0 %v288
    %446 = vmatpush2.msra.mxu0 %v287
    %447 = vmatprep.subr.mxu0 %v284
    %448 = vmatpush2.msra.mxu0 %v283
    %449 = vmatprep.subr.mxu0 %v280
    %450 = vmatpush2.msra.mxu0 %v279
    %451 = vmatprep.subr.mxu0 %v276
    %452 = vmatpush2.msra.mxu0 %v275
    %453 = vmatprep.subr.mxu0 %v272
    %454 = vmatpush2.msra.mxu0 %v271
    %455 = vmatprep.subr.mxu0 %v268
    %456 = vmatpush2.msra.mxu0 %v267
    %457 = vmatprep.subr.mxu0 %v264
    %458 = vmatpush2.msra.mxu0 %v263
    %459 = vmatprep.subr.mxu0 %v260
    %460 = vmatpush2.msra.mxu0 %v259
    %461 = vmatprep.subr.mxu0 %v256
    %462 = vmatpush2.msra.mxu0 %v255
    %463 = vmatprep.subr.mxu0 %v252
    %464 = vmatpush2.msra.mxu0 %v251
    %465 = vmatprep.subr.mxu0 %v248
    %466 = vmatpush2.msra.mxu0 %v247
    %467 = vmatprep.mubr.f32.mxu0 %v327
    %468 = vmatmul.mubr.f32.gmra.mxu0 %v323
    %v469 = vpop.f32.mrf.mxu0
    %v470 = vadd.f32 %v399, %v469
    %v471 = vpop.f32.mrf.mxu0
    %v472 = vadd.f32 %v401, %v471
    %473 = vdwg.mxu0
    %474 = vmatprep.subr.mxu0 %v118
    %475 = vmatpush1.msra.mxu0 %v117
    %476 = vmatprep.subr.mxu0 %v114
    %477 = vmatpush1.msra.mxu0 %v113
    %478 = vmatprep.subr.mxu0 %v110
    %479 = vmatpush1.msra.mxu0 %v109
    %480 = vmatprep.subr.mxu0 %v106
    %481 = vmatpush1.msra.mxu0 %v105
    %482 = vmatprep.subr.mxu0 %v102
    %483 = vmatpush1.msra.mxu0 %v101
    %484 = vmatprep.subr.mxu0 %v98
    %485 = vmatpush1.msra.mxu0 %v97
    %486 = vmatprep.subr.mxu0 %v94
    %487 = vmatpush1.msra.mxu0 %v93
    %488 = vmatprep.subr.mxu0 %v90
    %489 = vmatpush1.msra.mxu0 %v89
    %490 = vmatprep.subr.mxu0 %v86
    %491 = vmatpush1.msra.mxu0 %v85
    %492 = vmatprep.subr.mxu0 %v82
    %493 = vmatpush1.msra.mxu0 %v81
    %494 = vmatprep.subr.mxu0 %v78
    %495 = vmatpush1.msra.mxu0 %v77
    %496 = vmatprep.subr.mxu0 %v74
    %497 = vmatpush1.msra.mxu0 %v73
    %498 = vmatprep.subr.mxu0 %v70
    %499 = vmatpush1.msra.mxu0 %v69
    %500 = vmatprep.subr.mxu0 %v66
    %501 = vmatpush1.msra.mxu0 %v65
    %502 = vmatprep.subr.mxu0 %v62
    %503 = vmatpush1.msra.mxu0 %v61
    %504 = vmatprep.subr.mxu0 %v58
    %505 = vmatpush1.msra.mxu0 %v57
    %506 = vmatprep.subr.mxu0 %v182
    %507 = vmatpush2.msra.mxu0 %v181
    %508 = vmatprep.subr.mxu0 %v178
    %509 = vmatpush2.msra.mxu0 %v177
    %510 = vmatprep.subr.mxu0 %v174
    %511 = vmatpush2.msra.mxu0 %v173
    %512 = vmatprep.subr.mxu0 %v170
    %513 = vmatpush2.msra.mxu0 %v169
    %514 = vmatprep.subr.mxu0 %v166
    %515 = vmatpush2.msra.mxu0 %v165
    %516 = vmatprep.subr.mxu0 %v162
    %517 = vmatpush2.msra.mxu0 %v161
    %518 = vmatprep.subr.mxu0 %v158
    %519 = vmatpush2.msra.mxu0 %v157
    %520 = vmatprep.subr.mxu0 %v154
    %521 = vmatpush2.msra.mxu0 %v153
    %522 = vmatprep.subr.mxu0 %v150
    %523 = vmatpush2.msra.mxu0 %v149
    %524 = vmatprep.subr.mxu0 %v146
    %525 = vmatpush2.msra.mxu0 %v145
    %526 = vmatprep.subr.mxu0 %v142
    %527 = vmatpush2.msra.mxu0 %v141
    %528 = vmatprep.subr.mxu0 %v138
    %529 = vmatpush2.msra.mxu0 %v137
    %530 = vmatprep.subr.mxu0 %v134
    %531 = vmatpush2.msra.mxu0 %v133
    %532 = vmatprep.subr.mxu0 %v130
    %533 = vmatpush2.msra.mxu0 %v129
    %534 = vmatprep.subr.mxu0 %v126
    %535 = vmatpush2.msra.mxu0 %v125
    %536 = vmatprep.subr.mxu0 %v122
    %537 = vmatpush2.msra.mxu0 %v121
    %538 = vmatprep.mubr.f32.mxu0 %v319
    %539 = vmatmul.mubr.f32.gmra.mxu0 %v315
    %v540 = vpop.f32.mrf.mxu0
    %v541 = vadd.f32 0.0, %v540
    %v542 = vpop.f32.mrf.mxu0
    %v543 = vadd.f32 0.0, %v542
    %544 = vdwg.mxu0
    %545 = vmatprep.subr.mxu0 %v246
    %546 = vmatpush1.msra.mxu0 %v245
    %547 = vmatprep.subr.mxu0 %v242
    %548 = vmatpush1.msra.mxu0 %v241
    %549 = vmatprep.subr.mxu0 %v238
    %550 = vmatpush1.msra.mxu0 %v237
    %551 = vmatprep.subr.mxu0 %v234
    %552 = vmatpush1.msra.mxu0 %v233
    %553 = vmatprep.subr.mxu0 %v230
    %554 = vmatpush1.msra.mxu0 %v229
    %555 = vmatprep.subr.mxu0 %v226
    %556 = vmatpush1.msra.mxu0 %v225
    %557 = vmatprep.subr.mxu0 %v222
    %558 = vmatpush1.msra.mxu0 %v221
    %559 = vmatprep.subr.mxu0 %v218
    %560 = vmatpush1.msra.mxu0 %v217
    %561 = vmatprep.subr.mxu0 %v214
    %562 = vmatpush1.msra.mxu0 %v213
    %563 = vmatprep.subr.mxu0 %v210
    %564 = vmatpush1.msra.mxu0 %v209
    %565 = vmatprep.subr.mxu0 %v206
    %566 = vmatpush1.msra.mxu0 %v205
    %567 = vmatprep.subr.mxu0 %v202
    %568 = vmatpush1.msra.mxu0 %v201
    %569 = vmatprep.subr.mxu0 %v198
    %570 = vmatpush1.msra.mxu0 %v197
    %571 = vmatprep.subr.mxu0 %v194
    %572 = vmatpush1.msra.mxu0 %v193
    %573 = vmatprep.subr.mxu0 %v190
    %574 = vmatpush1.msra.mxu0 %v189
    %575 = vmatprep.subr.mxu0 %v186
    %576 = vmatpush1.msra.mxu0 %v185
    %577 = vmatprep.subr.mxu0 %v310
    %578 = vmatpush2.msra.mxu0 %v309
    %579 = vmatprep.subr.mxu0 %v306
    %580 = vmatpush2.msra.mxu0 %v305
    %581 = vmatprep.subr.mxu0 %v302
    %582 = vmatpush2.msra.mxu0 %v301
    %583 = vmatprep.subr.mxu0 %v298
    %584 = vmatpush2.msra.mxu0 %v297
    %585 = vmatprep.subr.mxu0 %v294
    %586 = vmatpush2.msra.mxu0 %v293
    %587 = vmatprep.subr.mxu0 %v290
    %588 = vmatpush2.msra.mxu0 %v289
    %589 = vmatprep.subr.mxu0 %v286
    %590 = vmatpush2.msra.mxu0 %v285
    %591 = vmatprep.subr.mxu0 %v282
    %592 = vmatpush2.msra.mxu0 %v281
    %593 = vmatprep.subr.mxu0 %v278
    %594 = vmatpush2.msra.mxu0 %v277
    %595 = vmatprep.subr.mxu0 %v274
    %596 = vmatpush2.msra.mxu0 %v273
    %597 = vmatprep.subr.mxu0 %v270
    %598 = vmatpush2.msra.mxu0 %v269
    %599 = vmatprep.subr.mxu0 %v266
    %600 = vmatpush2.msra.mxu0 %v265
    %601 = vmatprep.subr.mxu0 %v262
    %602 = vmatpush2.msra.mxu0 %v261
    %603 = vmatprep.subr.mxu0 %v258
    %604 = vmatpush2.msra.mxu0 %v257
    %605 = vmatprep.subr.mxu0 %v254
    %606 = vmatpush2.msra.mxu0 %v253
    %607 = vmatprep.subr.mxu0 %v250
    %608 = vmatpush2.msra.mxu0 %v249
    %609 = vmatprep.mubr.f32.mxu0 %v327
    %610 = vmatmul.mubr.f32.gmra.mxu0 %v323
    %v611 = vpop.f32.mrf.mxu0
    %v612 = vadd.f32 %v541, %v611
    %v613 = vpop.f32.mrf.mxu0
    %v614 = vadd.f32 %v543, %v613
    %615 = vdwg.mxu0
    %v616 = verf.f32.pop %v470
    %v617 = verf.f32.pop %v472
    %v618 = verf.f32.pop %v612
    %v619 = verf.f32.pop %v614
    %v620 = vld [vmem:[#allocation7] sm:$0xff]
    %v621 = vld [vmem:[#allocation7 + $0x8] sm:$0xff]
    %v622 = vld [vmem:[#allocation7 + $0x10] sm:$0xff]
    %v623 = vld [vmem:[#allocation7 + $0x18] sm:$0xff]
    %v624 = vld [vmem:[#allocation7 + $0x20] sm:$0xff]
    %v625 = vld [vmem:[#allocation7 + $0x28] sm:$0xff]
    %v626 = vld [vmem:[#allocation7 + $0x30] sm:$0xff]
    %v627 = vld [vmem:[#allocation7 + $0x38] sm:$0xff]
    %v628 = vld [vmem:[#allocation7 + $0x40] sm:$0xff]
    %v629 = vld [vmem:[#allocation7 + $0x48] sm:$0xff]
    %v630 = vld [vmem:[#allocation7 + $0x50] sm:$0xff]
    %v631 = vld [vmem:[#allocation7 + $0x58] sm:$0xff]
    %v632 = vld [vmem:[#allocation7 + $0x60] sm:$0xff]
    %v633 = vld [vmem:[#allocation7 + $0x68] sm:$0xff]
    %v634 = vld [vmem:[#allocation7 + $0x70] sm:$0xff]
    %v635 = vld [vmem:[#allocation7 + $0x78] sm:$0xff]
    %v636 = vld [vmem:[#allocation7 + $0x80] sm:$0xff]
    %v637 = vld [vmem:[#allocation7 + $0x88] sm:$0xff]
    %v638 = vld [vmem:[#allocation7 + $0x90] sm:$0xff]
    %v639 = vld [vmem:[#allocation7 + $0x98] sm:$0xff]
    %v640 = vld [vmem:[#allocation7 + $0xa0] sm:$0xff]
    %v641 = vld [vmem:[#allocation7 + $0xa8] sm:$0xff]
    %v642 = vld [vmem:[#allocation7 + $0xb0] sm:$0xff]
    %v643 = vld [vmem:[#allocation7 + $0xb8] sm:$0xff]
    %v644 = vld [vmem:[#allocation7 + $0xc0] sm:$0xff]
    %v645 = vld [vmem:[#allocation7 + $0xc8] sm:$0xff]
    %v646 = vld [vmem:[#allocation7 + $0xd0] sm:$0xff]
    %v647 = vld [vmem:[#allocation7 + $0xd8] sm:$0xff]
    %v648 = vld [vmem:[#allocation7 + $0xe0] sm:$0xff]
    %v649 = vld [vmem:[#allocation7 + $0xe8] sm:$0xff]
    %v650 = vld [vmem:[#allocation7 + $0xf0] sm:$0xff]
    %v651 = vld [vmem:[#allocation7 + $0xf8] sm:$0xff]
    %v652 = vld [vmem:[#allocation7 + $0x100] sm:$0xff]
    %v653 = vld [vmem:[#allocation7 + $0x108] sm:$0xff]
    %v654 = vld [vmem:[#allocation7 + $0x110] sm:$0xff]
    %v655 = vld [vmem:[#allocation7 + $0x118] sm:$0xff]
    %v656 = vld [vmem:[#allocation7 + $0x120] sm:$0xff]
    %v657 = vld [vmem:[#allocation7 + $0x128] sm:$0xff]
    %v658 = vld [vmem:[#allocation7 + $0x130] sm:$0xff]
    %v659 = vld [vmem:[#allocation7 + $0x138] sm:$0xff]
    %v660 = vld [vmem:[#allocation7 + $0x140] sm:$0xff]
    %v661 = vld [vmem:[#allocation7 + $0x148] sm:$0xff]
    %v662 = vld [vmem:[#allocation7 + $0x150] sm:$0xff]
    %v663 = vld [vmem:[#allocation7 + $0x158] sm:$0xff]
    %v664 = vld [vmem:[#allocation7 + $0x160] sm:$0xff]
    %v665 = vld [vmem:[#allocation7 + $0x168] sm:$0xff]
    %v666 = vld [vmem:[#allocation7 + $0x170] sm:$0xff]
    %v667 = vld [vmem:[#allocation7 + $0x178] sm:$0xff]
    %v668 = vld [vmem:[#allocation7 + $0x180] sm:$0xff]
    %v669 = vld [vmem:[#allocation7 + $0x188] sm:$0xff]
    %v670 = vld [vmem:[#allocation7 + $0x190] sm:$0xff]
    %v671 = vld [vmem:[#allocation7 + $0x198] sm:$0xff]
    %v672 = vld [vmem:[#allocation7 + $0x1a0] sm:$0xff]
    %v673 = vld [vmem:[#allocation7 + $0x1a8] sm:$0xff]
    %v674 = vld [vmem:[#allocation7 + $0x1b0] sm:$0xff]
    %v675 = vld [vmem:[#allocation7 + $0x1b8] sm:$0xff]
    %v676 = vld [vmem:[#allocation7 + $0x1c0] sm:$0xff]
    %v677 = vld [vmem:[#allocation7 + $0x1c8] sm:$0xff]
    %v678 = vld [vmem:[#allocation7 + $0x1d0] sm:$0xff]
    %v679 = vld [vmem:[#allocation7 + $0x1d8] sm:$0xff]
    %v680 = vld [vmem:[#allocation7 + $0x1e0] sm:$0xff]
    %v681 = vld [vmem:[#allocation7 + $0x1e8] sm:$0xff]
    %v682 = vld [vmem:[#allocation7 + $0x1f0] sm:$0xff]
    %v683 = vld [vmem:[#allocation7 + $0x1f8] sm:$0xff]
    %684 = vmatprep.subr.mxu0 0.0
    %685 = vmatpush1.msra.mxu0 %v635
    %686 = vmatprep.subr.mxu0 0.0
    %687 = vmatpush1.msra.mxu0 %v634
    %688 = vmatprep.subr.mxu0 0.0
    %689 = vmatpush1.msra.mxu0 %v633
    %690 = vmatprep.subr.mxu0 0.0
    %691 = vmatpush1.msra.mxu0 %v632
    %692 = vmatprep.subr.mxu0 0.0
    %693 = vmatpush1.msra.mxu0 %v631
    %694 = vmatprep.subr.mxu0 0.0
    %695 = vmatpush1.msra.mxu0 %v630
    %696 = vmatprep.subr.mxu0 0.0
    %697 = vmatpush1.msra.mxu0 %v629
    %698 = vmatprep.subr.mxu0 0.0
    %699 = vmatpush1.msra.mxu0 %v628
    %700 = vmatprep.subr.mxu0 0.0
    %701 = vmatpush1.msra.mxu0 %v627
    %702 = vmatprep.subr.mxu0 0.0
    %703 = vmatpush1.msra.mxu0 %v626
    %704 = vmatprep.subr.mxu0 0.0
    %705 = vmatpush1.msra.mxu0 %v625
    %706 = vmatprep.subr.mxu0 0.0
    %707 = vmatpush1.msra.mxu0 %v624
    %708 = vmatprep.subr.mxu0 0.0
    %709 = vmatpush1.msra.mxu0 %v623
    %710 = vmatprep.subr.mxu0 0.0
    %711 = vmatpush1.msra.mxu0 %v622
    %712 = vmatprep.subr.mxu0 0.0
    %713 = vmatpush1.msra.mxu0 %v621
    %714 = vmatprep.subr.mxu0 0.0
    %715 = vmatpush1.msra.mxu0 %v620
    %716 = vmatprep.subr.mxu0 0.0
    %717 = vmatpush2.msra.mxu0 %v651
    %718 = vmatprep.subr.mxu0 0.0
    %719 = vmatpush2.msra.mxu0 %v650
    %720 = vmatprep.subr.mxu0 0.0
    %721 = vmatpush2.msra.mxu0 %v649
    %722 = vmatprep.subr.mxu0 0.0
    %723 = vmatpush2.msra.mxu0 %v648
    %724 = vmatprep.subr.mxu0 0.0
    %725 = vmatpush2.msra.mxu0 %v647
    %726 = vmatprep.subr.mxu0 0.0
    %727 = vmatpush2.msra.mxu0 %v646
    %728 = vmatprep.subr.mxu0 0.0
    %729 = vmatpush2.msra.mxu0 %v645
    %730 = vmatprep.subr.mxu0 0.0
    %731 = vmatpush2.msra.mxu0 %v644
    %732 = vmatprep.subr.mxu0 0.0
    %733 = vmatpush2.msra.mxu0 %v643
    %734 = vmatprep.subr.mxu0 0.0
    %735 = vmatpush2.msra.mxu0 %v642
    %736 = vmatprep.subr.mxu0 0.0
    %737 = vmatpush2.msra.mxu0 %v641
    %738 = vmatprep.subr.mxu0 0.0
    %739 = vmatpush2.msra.mxu0 %v640
    %740 = vmatprep.subr.mxu0 0.0
    %741 = vmatpush2.msra.mxu0 %v639
    %742 = vmatprep.subr.mxu0 0.0
    %743 = vmatpush2.msra.mxu0 %v638
    %744 = vmatprep.subr.mxu0 0.0
    %745 = vmatpush2.msra.mxu0 %v637
    %746 = vmatprep.subr.mxu0 0.0
    %747 = vmatpush2.msra.mxu0 %v636
    %748 = vmatprep.mubr.f32.mxu0 %v617
    %749 = vmatmul.mubr.f32.gmra.mxu0 %v616
    %v750 = vpop.f32.mrf.mxu0
    %v751 = vadd.f32 0.0, %v750
    %v752 = vpop.f32.mrf.mxu0
    %753 = vdwg.mxu0
    %754 = vmatprep.subr.mxu0 0.0
    %755 = vmatpush1.msra.mxu0 %v667
    %756 = vmatprep.subr.mxu0 0.0
    %757 = vmatpush1.msra.mxu0 %v666
    %758 = vmatprep.subr.mxu0 0.0
    %759 = vmatpush1.msra.mxu0 %v665
    %760 = vmatprep.subr.mxu0 0.0
    %761 = vmatpush1.msra.mxu0 %v664
    %762 = vmatprep.subr.mxu0 0.0
    %763 = vmatpush1.msra.mxu0 %v663
    %764 = vmatprep.subr.mxu0 0.0
    %765 = vmatpush1.msra.mxu0 %v662
    %766 = vmatprep.subr.mxu0 0.0
    %767 = vmatpush1.msra.mxu0 %v661
    %768 = vmatprep.subr.mxu0 0.0
    %769 = vmatpush1.msra.mxu0 %v660
    %770 = vmatprep.subr.mxu0 0.0
    %771 = vmatpush1.msra.mxu0 %v659
    %772 = vmatprep.subr.mxu0 0.0
    %773 = vmatpush1.msra.mxu0 %v658
    %774 = vmatprep.subr.mxu0 0.0
    %775 = vmatpush1.msra.mxu0 %v657
    %776 = vmatprep.subr.mxu0 0.0
    %777 = vmatpush1.msra.mxu0 %v656
    %778 = vmatprep.subr.mxu0 0.0
    %779 = vmatpush1.msra.mxu0 %v655
    %780 = vmatprep.subr.mxu0 0.0
    %781 = vmatpush1.msra.mxu0 %v654
    %782 = vmatprep.subr.mxu0 0.0
    %783 = vmatpush1.msra.mxu0 %v653
    %784 = vmatprep.subr.mxu0 0.0
    %785 = vmatpush1.msra.mxu0 %v652
    %786 = vmatprep.subr.mxu0 0.0
    %787 = vmatpush2.msra.mxu0 %v683
    %788 = vmatprep.subr.mxu0 0.0
    %789 = vmatpush2.msra.mxu0 %v682
    %790 = vmatprep.subr.mxu0 0.0
    %791 = vmatpush2.msra.mxu0 %v681
    %792 = vmatprep.subr.mxu0 0.0
    %793 = vmatpush2.msra.mxu0 %v680
    %794 = vmatprep.subr.mxu0 0.0
    %795 = vmatpush2.msra.mxu0 %v679
    %796 = vmatprep.subr.mxu0 0.0
    %797 = vmatpush2.msra.mxu0 %v678
    %798 = vmatprep.subr.mxu0 0.0
    %799 = vmatpush2.msra.mxu0 %v677
    %800 = vmatprep.subr.mxu0 0.0
    %801 = vmatpush2.msra.mxu0 %v676
    %802 = vmatprep.subr.mxu0 0.0
    %803 = vmatpush2.msra.mxu0 %v675
    %804 = vmatprep.subr.mxu0 0.0
    %805 = vmatpush2.msra.mxu0 %v674
    %806 = vmatprep.subr.mxu0 0.0
    %807 = vmatpush2.msra.mxu0 %v673
    %808 = vmatprep.subr.mxu0 0.0
    %809 = vmatpush2.msra.mxu0 %v672
    %810 = vmatprep.subr.mxu0 0.0
    %811 = vmatpush2.msra.mxu0 %v671
    %812 = vmatprep.subr.mxu0 0.0
    %813 = vmatpush2.msra.mxu0 %v670
    %814 = vmatprep.subr.mxu0 0.0
    %815 = vmatpush2.msra.mxu0 %v669
    %816 = vmatprep.subr.mxu0 0.0
    %817 = vmatpush2.msra.mxu0 %v668
    %818 = vmatprep.mubr.f32.mxu0 %v619
    %819 = vmatmul.mubr.f32.gmra.mxu0 %v618
    %v820 = vpop.f32.mrf.mxu0
    %v821 = vadd.f32 %v751, %v820
    %v822 = vpop.f32.mrf.mxu0
    %823 = vdwg.mxu0
    %824 = vst [vmem:[#allocation8] sm:$0x1] %v821
    // Predicated region
    $region26: #{tpu_custom_call.1} parent=1 // pred_check
      _
    $region27: #{tpu_custom_call.1} parent=1 // pred_check_branch
      %826 = sbr.rel (0) target = $region29
    $region28: #{tpu_custom_call.1} parent=1 // pred_region
      %s828 = ssub.s32 16, 16
      %829 = vsyncadd [#allocation4], %s828
      %s831 = sshll.u32 [#allocation8], 4
      %s832 = int_to_ptr.vmem [resolvable:$true] %s831
      %834 = dma.vmem_to_hbm [thread:$0]  %s832, 16, %s3, [#allocation4]
    $region29: #{tpu_custom_call.1} parent=1 // pred_fallthru
      _
    // Predicated region
    $region30: #{tpu_custom_call.1} parent=1 // pred_check
      _
    $region31: #{tpu_custom_call.1} parent=1 // pred_check_branch
      %836 = sbr.rel (0) target = $region33
    $region32: #{tpu_custom_call.1} parent=1 // pred_region
      %837 = dma.done [#allocation4], 16
    $region33: #{tpu_custom_call.1} parent=1 // pred_fallthru
      _
    %838 = vsyncpa [#allocation3], 1
    %839 = vsyncpa [#allocation6], 1
    %840 = vsyncpa [#allocation4], 1

</llo_original>
